<compile_context>
chip_gen: v7x
topology: tpu7x:2x2x1
jax: 0.10.0
libtpu: 0.0.40
codegen_flags: <defaults>
</compile_context>

<pallas_src>
import functools

import jax
import jax.numpy as jnp
from jax.experimental import pallas as pl
from jax.experimental.pallas import tpu as pltpu


def _nce_partial_kernel(x_ref, part_ref, *, total_rows, tile_rows):
    """One batch tile: partial sum of (logsumexp(row) - row[0]) over valid rows."""
    i = pl.program_id(0)

    x = x_ref[...].astype(jnp.float32)                                  # [TB, N]

    # Numerically-stable logsumexp along the logit (lane) axis.
    m = jnp.max(x, axis=-1, keepdims=True)                              # [TB, 1]
    lse = jnp.log(jnp.sum(jnp.exp(x - m), axis=-1, keepdims=True)) + m  # [TB, 1]

    per_row = lse - x[:, 0:1]                                           # [TB, 1]

    # Mask rows that fall past the true batch size (padded tail of last tile).
    row_ids = i * tile_rows + jax.lax.broadcasted_iota(
        jnp.int32, (tile_rows, 1), 0)
    per_row = jnp.where(row_ids < total_rows, per_row, 0.0)

    partial = jnp.sum(per_row)                                          # scalar f32
    # Broadcast the scalar into this tile's private (1, 8, 128) output block:
    # lane-dense, unmasked stores, and independent per grid step (parallel-safe).
    part_ref[...] = jnp.full(part_ref.shape, partial, dtype=jnp.float32)


def _choose_tile_rows(n, vmem_budget_bytes=4 * 1024 * 1024):
    """Rows per tile so the f32 working set stays ~<= 4 MiB (all TPU gens)."""
    lanes = ((n + 127) // 128) * 128          # lane padding of the VMEM tile
    bytes_per_row = lanes * 4                 # f32 after in-kernel upcast
    tb = max(8, min(vmem_budget_bytes // bytes_per_row, 4096))
    return int((tb // 8) * 8)


def _normalize_tile_rows(tb, batch):
    """Keep block shapes layout-legal: full batch in one tile, or 8-aligned."""
    if tb >= batch:
        return batch                          # single tile == full array dim
    return max(8, (tb // 8) * 8)              # sublane-aligned partial tiles


def nce_softmax_loss(x, tile_rows=None):
    """x: [bsz, n, 1] or [bsz, n], any float dtype. Returns scalar f32 loss."""
    if x.ndim == 3:
        x = jnp.squeeze(x, axis=-1)           # explicit axis: safe for bsz == 1
    if x.ndim != 2:
        raise ValueError("expected input of shape [bsz, n] or [bsz, n, 1]")
    B, N = x.shape

    tb = tile_rows if tile_rows is not None else _choose_tile_rows(N)
    tb = _normalize_tile_rows(int(tb), B)
    num_tiles = pl.cdiv(B, tb)

    kernel = functools.partial(_nce_partial_kernel, total_rows=B, tile_rows=tb)

    partials = pl.pallas_call(
        kernel,
        out_shape=jax.ShapeDtypeStruct((num_tiles, 8, 128), jnp.float32),
        grid_spec=pltpu.PrefetchScalarGridSpec(
            num_scalar_prefetch=0,
            grid=(num_tiles,),
            in_specs=[pl.BlockSpec((tb, N), lambda i: (i, 0))],
            out_specs=pl.BlockSpec((1, 8, 128), lambda i: (i, 0, 0)),
        ),
        compiler_params=pltpu.CompilerParams(
            dimension_semantics=("parallel",),     # megacore sharding on v7x
            vmem_limit_bytes=32 * 1024 * 1024,     # safe on v5e/v6e/v7x
        ),
    )(x)

    # Final reduction + mean by the TRUE batch size in plain JAX (tiny).
    return jnp.sum(partials[:, 0, 0]) / B


def _ref_loss(x):
    """Pure-JAX reference (CrossEntropyLoss, target=0, mean reduction)."""
    x2d = x
    if x2d.ndim == 3:
        x2d = jnp.squeeze(x2d, axis=-1)
    x2d = x2d.astype(jnp.float32)
    lse = jax.scipy.special.logsumexp(x2d, axis=-1)
    return jnp.mean(lse - x2d[:, 0])


if __name__ == "__main__":
    key = jax.random.PRNGKey(0)
    k1, k2, k3 = jax.random.split(key, 3)

    # CRD-style toy config: 1 positive + 16 negatives, batch 2.
    x_small = jax.random.normal(k1, (2, 17, 1), dtype=jnp.float32)
    loss = nce_softmax_loss(x_small)
    jax.block_until_ready(loss)
    ref = _ref_loss(x_small)
    assert jnp.allclose(loss, ref, atol=1e-5, rtol=1e-5), (loss, ref)

    # Multi-tile path with a ragged tail (exercises masking + true-B mean).
    x_multi = jax.random.normal(k2, (37, 129, 1), dtype=jnp.float32)
    loss_m = nce_softmax_loss(x_multi, tile_rows=8)
    jax.block_until_ready(loss_m)
    ref_m = _ref_loss(x_multi)
    assert jnp.allclose(loss_m, ref_m, atol=1e-5, rtol=1e-5), (loss_m, ref_m)

    # Native-bf16 input path (halved HBM traffic; upcast happens in-kernel).
    x_bf16 = jax.random.normal(k3, (16, 33, 1), dtype=jnp.bfloat16)
    loss_b = nce_softmax_loss(x_bf16)
    jax.block_until_ready(loss_b)
    ref_b = _ref_loss(x_bf16)
    assert jnp.allclose(loss_b, ref_b, atol=1e-4, rtol=1e-4), (loss_b, ref_b)

    print("KERNEL_OK")
</pallas_src>

<mosaic_0001>
module attributes {stable_mosaic.version = 11 : i64} {
  func.func @_nce_partial_kernel(%arg0: i32, %arg1: memref<2x17xf32, #tpu.memory_space<vmem>>, %arg2: memref<1x8x128xf32, #tpu.memory_space<vmem>>) attributes {dimension_semantics = [#tpu.dimension_semantics<parallel>], iteration_bounds = array<i64: 1>, scalar_prefetch = 0 : i64, scratch_operands = 0 : i64, tpu.core_type = #tpu.core_type<tc>, window_params = [{transform_indices = @transform_0, window_bounds = array<i64: 2, 17>}, {transform_indices = @transform_1, window_bounds = array<i64: 1, 8, 128>}]} {
    %c0 = arith.constant 0 : index
    %c0_0 = arith.constant 0 : index
    %0 = vector.load %arg1[%c0, %c0_0] : memref<2x17xf32, #tpu.memory_space<vmem>>, vector<2x17xf32>
    %cst = arith.constant dense<0xFF800000> : vector<2xf32>
    %1 = vector.multi_reduction <maximumf>, %0, %cst [1] : vector<2x17xf32> to vector<2xf32>
    %2 = vector.shape_cast %1 : vector<2xf32> to vector<2x1xf32>
    %3 = vector.broadcast %2 : vector<2x1xf32> to vector<2x17xf32>
    %4 = arith.subf %0, %3 : vector<2x17xf32>
    %5 = math.exp %4 : vector<2x17xf32>
    %cst_1 = arith.constant dense<0.000000e+00> : vector<2xf32>
    %6 = vector.multi_reduction <add>, %5, %cst_1 [1] : vector<2x17xf32> to vector<2xf32>
    %7 = vector.shape_cast %6 : vector<2xf32> to vector<2x1xf32>
    %8 = math.log %7 : vector<2x1xf32>
    %9 = arith.addf %8, %2 : vector<2x1xf32>
    %10 = vector.extract_strided_slice %0 {offsets = [0, 0], sizes = [2, 1], strides = [1, 1]} : vector<2x17xf32> to vector<2x1xf32>
    %11 = arith.subf %9, %10 : vector<2x1xf32>
    %c2_i32 = arith.constant 2 : i32
    %12 = arith.muli %arg0, %c2_i32 : i32
    %13 = tpu.iota {dimensions = array<i32: 0>} : vector<2x1xi32>
    %14 = vector.broadcast %12 : i32 to vector<2x1xi32>
    %15 = arith.addi %14, %13 : vector<2x1xi32>
    %c2_i32_2 = arith.constant 2 : i32
    %16 = vector.broadcast %c2_i32_2 : i32 to vector<2x1xi32>
    %17 = arith.cmpi slt, %15, %16 : vector<2x1xi32>
    %cst_3 = arith.constant 0.000000e+00 : f32
    %18 = vector.broadcast %cst_3 : f32 to vector<2x1xf32>
    %19 = arith.select %17, %11, %18 : vector<2x1xi1>, vector<2x1xf32>
    %20 = vector.shape_cast %19 : vector<2x1xf32> to vector<1x2x1xf32>
    %cst_4 = arith.constant dense<0.000000e+00> : vector<1xf32>
    %21 = vector.multi_reduction <add>, %20, %cst_4 [1, 2] : vector<1x2x1xf32> to vector<1xf32>
    %22 = vector.shape_cast %21 : vector<1xf32> to vector<1x1x1xf32>
    %23 = vector.extract %22[0, 0, 0] : f32 from vector<1x1x1xf32>
    %24 = vector.broadcast %23 : f32 to vector<1x8x128xf32>
    %c0_5 = arith.constant 0 : index
    %c0_6 = arith.constant 0 : index
    %c0_7 = arith.constant 0 : index
    %25 = vector.load %arg2[%c0_5, %c0_6, %c0_7] : memref<1x8x128xf32, #tpu.memory_space<vmem>>, vector<1x8x128xf32>
    tpu.vector_store %arg2[%c0_5, %c0_6, %c0_7], %24 {strides = array<i32>} : memref<1x8x128xf32, #tpu.memory_space<vmem>>, vector<1x8x128xf32>,
    return
  }
  func.func @transform_0(%arg0: i32) -> (i32, i32) {
    %c0_i32 = arith.constant 0 : i32
    %c0_i32_0 = arith.constant 0 : i32
    return %arg0, %c0_i32 : i32, i32
  }
  func.func @transform_1(%arg0: i32) -> (i32, i32, i32) {
    %c0_i32 = arith.constant 0 : i32
    %c0_i32_0 = arith.constant 0 : i32
    %c0_i32_1 = arith.constant 0 : i32
    return %arg0, %c0_i32, %c0_i32_0 : i32, i32, i32
  }
}

</mosaic_0001>

<llo_original>
// kernel: tpu_custom_call.1
$region0: #{tpu_custom_call.1}
  #allocation0 [shape = 'u32[]', space=smem, size = 0x4, offset = 0x4, fixed_abs, tag = 'smem constant byte address 0x4 - core index']
  #allocation1 [shape = 'u32[144,128]{1,0:T(1,128)}', space=vmem, size = 0x12000, scoped, tag = 'internal scratch']
  %s0 = inlined_call_operand.hbm [shape: f32[2,17], index: 0, kind: input, shape index: {}]
  %s1 = inlined_call_operand.hbm [shape: f32[1,8,128], index: 1, kind: output, shape index: {}]
  %s2 = sld [smem:[#allocation0]]
  $region18: #{tpu_custom_call.1} parent=0
    _
  %s4 = ssub.s32 1, %s2
  %s5 = scalar_select 0, %s4, %s2
  $region1: #{tpu_custom_call.1} parent=0
    #allocation2 [shape = 'u8[1024]{0}', space=vmem, size = 0x400, scoped, tag = 'input window, operand 0, single buffered']
    #allocation3 [shape = 's32[1]{0}', space=sflag, size = 0x4, scoped, tag = 'scoped memory for tpu_custom_call.1']
    #allocation4 [shape = 's32[1]{0}', space=sflag, size = 0x4, scoped, tag = 'scoped memory for tpu_custom_call.1']
    #allocation5 [shape = 'u8[4096]{0}', space=vmem, size = 0x1000, scoped, tag = 'output window, operand 0, single buffered']
    %6 = vsyncpa [#allocation3], 0
    %7 = vsyncpa [#allocation4], 0
    // Predicated region
    $region2: #{tpu_custom_call.1} parent=1 // pred_check
      _
    $region3: #{tpu_custom_call.1} parent=1 // pred_check_branch
      %9 = sbr.rel (0) target = $region5
    $region4: #{tpu_custom_call.1} parent=1 // pred_region
      %s11 = ssub.s32 32, 32
      %12 = vsyncadd [#allocation3], %s11
      %s14 = sshll.u32 [#allocation2], 4
      %s15 = int_to_ptr.vmem [resolvable:$true] %s14
      %17 = dma.hbm_to_vmem [thread:$0]  %s0, 32, %s15, [#allocation3]
    $region5: #{tpu_custom_call.1} parent=1 // pred_fallthru
      _
    // Predicated region
    $region6: #{tpu_custom_call.1} parent=1 // pred_check
      _
    $region7: #{tpu_custom_call.1} parent=1 // pred_check_branch
      %19 = sbr.rel (0) target = $region9
    $region8: #{tpu_custom_call.1} parent=1 // pred_region
      %20 = dma.done [#allocation3], 32
    $region9: #{tpu_custom_call.1} parent=1 // pred_fallthru
      _
    %v21 = vld [vmem:[#allocation2] sm:$0x3]
    %vm22 = vcmask 132096
    %v23 = vsel %vm22, %v21, -inf
    %24 = vmax.xlane.f32.xlu0 %v23
    %v25 = vpop.xlane.xlu0 %24
    %v26 = vsub.f32 %v21, %v25
    %v27 = vmul.f32 %v26, 1.442695
    %v28 = vpow.pop %v27
    %v29 = vsel %vm22, %v28, 0.0
    %30 = vadd.xlane.f32.xlu0 %v29
    %v31 = vpop.xlane.xlu0 %30
    %v32 = vlog2.pop %v31
    %v33 = vmul.f32 %v32, 0.6931472
    %v34 = vadd.f32 %v33, %v25
    %v35 = vsub.f32 %v34, %v21
    %s36 = smul.u32 0, 2
    %v37 = vlaneseq
    %v38 = vshrl.u32 %v37, 7
    %v39 = vstv %s36
    %v40 = vadd.s32 %v39, %v38
    %vm41 = vcmp.lt.s32.totalorder %v40, 2
    %v42 = vsel %vm41, %v35, 0.0
    %vm43 = vcmask 1024
    %v44 = vsel %vm43, %v42, 0.0
    %45 = vadd.xlane.f32.xlu0 %v44
    %v46 = vpop.xlane.xlu0 %45
    %v47 = vrot.slane %v46, 4
    %v48 = vadd.f32 %v46, %v47
    %v49 = vrot.slane %v48, 2
    %v50 = vadd.f32 %v48, %v49
    %v51 = vrot.slane %v50, 1
    %v52 = vadd.f32 %v50, %v51
    %s53 = vtos %v52
    %v54 = vstv %s53
    %55 = vst [vmem:[#allocation5] sm:$0xff] %v54
    // Predicated region
    $region10: #{tpu_custom_call.1} parent=1 // pred_check
      _
    $region11: #{tpu_custom_call.1} parent=1 // pred_check_branch
      %57 = sbr.rel (0) target = $region13
    $region12: #{tpu_custom_call.1} parent=1 // pred_region
      %s59 = ssub.s32 128, 128
      %60 = vsyncadd [#allocation4], %s59
      %s62 = sshll.u32 [#allocation5], 4
      %s63 = int_to_ptr.vmem [resolvable:$true] %s62
      %65 = dma.vmem_to_hbm [thread:$0]  %s63, 128, %s1, [#allocation4]
    $region13: #{tpu_custom_call.1} parent=1 // pred_fallthru
      _
    // Predicated region
    $region14: #{tpu_custom_call.1} parent=1 // pred_check
      _
    $region15: #{tpu_custom_call.1} parent=1 // pred_check_branch
      %67 = sbr.rel (0) target = $region17
    $region16: #{tpu_custom_call.1} parent=1 // pred_region
      %68 = dma.done [#allocation4], 128
    $region17: #{tpu_custom_call.1} parent=1 // pred_fallthru
      _
    %69 = vsyncpa [#allocation3], 1
    %70 = vsyncpa [#allocation4], 1

</llo_original>
